<compile_context>
chip_gen: v7x
topology: tpu7x:2x2x1
jax: 0.10.0
libtpu: 0.0.40
codegen_flags: <defaults>
</compile_context>

<pallas_src>
import functools

import jax
import jax.numpy as jnp
from jax.experimental import pallas as pl
from jax.experimental.pallas import tpu as pltpu


_NEG_BIAS = -30000.0  # additive mask value for non-edges (bf16-representable)


def _round_up(x: int, m: int) -> int:
    return (x + m - 1) // m * m


def _gat_kernel(hw_ref, e_src_ref, e_tgt_ref, bias_ref, out_ref, *,
                denom_col: int, hw_resident: bool):
    """One (row-tile, head) grid step: TM target rows of one attention head."""
    # Projected source features for this head (bf16, precomputed in wrapper).
    hw = hw_ref[pl.program_id(1)] if hw_resident else hw_ref[0]   # (N_pad, D_pad)

    e_s = e_src_ref[0]                                   # (1, N_pad) f32
    e_t = e_tgt_ref[0]                                   # (TM, 1)    f32

    # E_pre[t, s] = e_tgt[t] + e_src[s]; leaky_relu(slope=0.2) == max(x, 0.2x).
    scores = e_t + e_s                                   # (TM, N_pad) f32
    scores = jnp.maximum(scores, 0.2 * scores)

    # Masked softmax over source nodes.  The bf16 additive bias (0 on edges,
    # -3e4 elsewhere) is read exactly once (upcast fuses into the add), and
    # the row max is clamped so every masked entry's exp underflows to an
    # exact 0 — no f32 bias temp, no second compare+select pass.
    s = scores + bias_ref[...]                           # (TM, N_pad) f32
    m = jnp.maximum(jnp.max(s, axis=-1, keepdims=True), -1e4)
    # bf16 exp: halves EUP work + slab bytes on v6e/v7x (v5e upcasts anyway),
    # and p is already the dtype the aggregation matmul wants.
    p = jnp.exp((s - m).astype(jnp.bfloat16))            # (TM, N_pad) bf16

    # Scatter-sum over edges == p @ h_w on the MXU.  Column `denom_col` of
    # h_w is all 1.0, so the softmax denominator comes out of the same matmul
    # for free; the division is applied on the small (TM, D_pad) tile.
    agg = jnp.dot(p, hw, preferred_element_type=jnp.float32)   # (TM, D_pad) f32
    denom = agg[:, denom_col:denom_col + 1]                    # (TM, 1)
    inv = pl.reciprocal(jnp.maximum(denom, 1e-20), approx=True)
    h_pre = agg * inv

    # ELU with clamped exp argument (no inf on the discarded branch).
    elu = jnp.where(h_pre > 0.0, h_pre, jnp.exp(jnp.minimum(h_pre, 0.0)) - 1.0)
    out_ref[0] = elu.astype(out_ref.dtype)
    # TODO(synk): train-mode dropout, skip connection (W_skip) and the
    #             reduce='concat'/'mean' variants are not exercised here
    #             (module defaults are dropout=0, skip=False, reduce='none').


def gat_layer_forward(h_in, edge_index, W, A_src, A_tgt, *, block_rows=None):
    """Pallas GAT forward. Returns (N_h, N, D_out) f32 — matches reduce='none'."""
    N, D_in = h_in.shape
    N_h, D_out, _ = W.shape

    # ---- generation-aware tiling / VMEM budget -----------------------------
    try:
        vmem_cap = int(pltpu.get_tpu_info().vmem_capacity_bytes)
    except Exception:  # unknown chip / interpret mode: assume the smallest (v7x)
        vmem_cap = 64 * 1024 * 1024
    if block_rows is None:
        # v7x (64 MiB/TC): small row tile; v5e/v6e (128 MiB): go big.
        block_rows = 128 if vmem_cap <= 64 * 1024 * 1024 else 512
    vmem_limit = min(int(vmem_cap * 0.85), 112 * 1024 * 1024)

    D_pad = _round_up(D_out + 1, 128)     # +1 spare column carries the denom
    TM = min(_round_up(block_rows, 128), _round_up(N, 128))   # target-row tile
    N_pad = _round_up(N, TM)
    assert N_pad % TM == 0

    # ---- plain-JAX glue -----------------------------------------------------
    src = edge_index[0].astype(jnp.int32)
    tgt = edge_index[1].astype(jnp.int32)

    # Additive attention bias: 0 where edge s->t exists, -3e4 otherwise.
    # bf16: half the HBM stream of an f32 mask.  (Dense form collapses
    # duplicate edges — same caveat as the in-file reference.)
    # TODO(synk): int8 bias (scale by 3e4 in-kernel) to halve the stream on v5e.
    bias = jnp.full((N_pad, N_pad), _NEG_BIAS, jnp.bfloat16)
    bias = bias.at[tgt, src].set(0.0)

    # Per-head projection, precomputed once as one big XLA matmul (K = D_in is
    # far too skinny for the MXU inside the kernel).  Padded to
    # (N_h, N_pad, D_pad) bf16 with a 1.0 column at index D_out so the
    # aggregation matmul also yields the softmax denominator.
    h_pad = jnp.pad(h_in, ((0, N_pad - N), (0, 0)))
    h_w = jnp.einsum("nd,hod->hno", h_pad, W)                       # f32
    e_src = jnp.einsum("hno,ho->hn", h_w, A_src)[:, None, :]        # (N_h,1,N_pad)
    e_tgt = jnp.einsum("hno,ho->hn", h_w, A_tgt)[:, :, None]        # (N_h,N_pad,1)
    h_w = jnp.concatenate(
        [h_w,
         jnp.ones((N_h, N_pad, 1), h_w.dtype),
         jnp.zeros((N_h, N_pad, D_pad - D_out - 1), h_w.dtype)],
        axis=-1).astype(jnp.bfloat16)                               # (N_h,N_pad,D_pad)

    # Keep the whole projected table resident in VMEM when small enough;
    # otherwise stream it per head.
    hw_resident = (N_h * N_pad * D_pad * 2) <= min(16 * 1024 * 1024, vmem_cap // 8)
    if hw_resident:
        hw_spec = pl.BlockSpec((N_h, N_pad, D_pad), lambda r, h: (0, 0, 0))
        # TODO(synk): pipeline_mode=pl.Buffered(1) would reclaim the redundant
        #             second buffer of this constant-index input.
    else:
        hw_spec = pl.BlockSpec((1, N_pad, D_pad), lambda r, h: (h, 0, 0))

    kernel = functools.partial(_gat_kernel, denom_col=D_out, hw_resident=hw_resident)

    num_row_tiles = N_pad // TM
    out = pl.pallas_call(
        kernel,
        out_shape=jax.ShapeDtypeStruct((N_h, N_pad, D_pad), jnp.bfloat16),
        grid_spec=pltpu.PrefetchScalarGridSpec(
            num_scalar_prefetch=0,
            # row tiles outermost: the big (TM, N_pad) bias slab stays resident
            # across the inner head loop instead of being re-streamed per head.
            grid=(num_row_tiles, N_h),
            in_specs=[
                hw_spec,                                              # h_w (bf16)
                pl.BlockSpec((1, 1, N_pad), lambda r, h: (h, 0, 0)),  # e_src[h]
                pl.BlockSpec((1, TM, 1), lambda r, h: (h, r, 0)),     # e_tgt[h, r]
                pl.BlockSpec((TM, N_pad), lambda r, h: (r, 0)),       # bias tile
            ],
            out_specs=pl.BlockSpec((1, TM, D_pad), lambda r, h: (h, r, 0)),
        ),
        compiler_params=pltpu.CompilerParams(
            dimension_semantics=("parallel", "parallel"),
            vmem_limit_bytes=vmem_limit,
        ),
    )(h_w, e_src, e_tgt, bias)

    # bf16 writeback halves the output HBM stream; upcast only the small slice.
    return out[:, :N, :D_out].astype(jnp.float32)


def glorot(key, shape):
    """torch_geometric-style glorot: U(-a, a), a = sqrt(6 / (fan_in + fan_out))."""
    a = (6.0 / (shape[-2] + shape[-1])) ** 0.5
    return jax.random.uniform(key, shape, jnp.float32, minval=-a, maxval=a)


def _reference(h_in, edge_index, W, A_src, A_tgt):
    """Pure-JAX dense reference of the edge-list GAT math (f32)."""
    N = h_in.shape[0]
    adj = jnp.zeros((N, N), bool).at[edge_index[1], edge_index[0]].set(True)
    h_w = jnp.einsum("ij,hkj->hik", h_in, W)                  # (N_h, N, D_out)
    e_src = jnp.einsum("hik,hk->hi", h_w, A_src)
    e_tgt = jnp.einsum("hik,hk->hi", h_w, A_tgt)
    scores = e_tgt[:, :, None] + e_src[:, None, :]
    scores = jnp.where(scores >= 0, scores, 0.2 * scores)
    sm = jnp.where(adj[None], scores, jnp.float32(-1e30))
    m = jnp.max(sm, axis=-1, keepdims=True)
    p = jnp.where(adj[None], jnp.exp(sm - m), 0.0)
    alpha = p / jnp.maximum(p.sum(-1, keepdims=True), 1e-16)
    pre = jnp.einsum("hts,hsk->htk", alpha, h_w)
    return jnp.where(pre > 0, pre, jnp.exp(jnp.minimum(pre, 0.0)) - 1.0)


if __name__ == "__main__":
    # small, deterministic problem
    N, D_in, D_out, N_h = 16, 8, 16, 2

    key = jax.random.PRNGKey(0)
    k_h, k_w, k_as, k_at = jax.random.split(key, 4)

    H_in = jax.random.normal(k_h, (N, D_in), jnp.float32)
    W = glorot(k_w, (N_h, D_out, D_in))
    A_src = glorot(k_as, (N_h, D_out, 1))[..., 0]
    A_tgt = glorot(k_at, (N_h, D_out, 1))[..., 0]

    # deterministic graph: ring edges i -> (i+1) % N plus self-loops
    nodes = jnp.arange(N, dtype=jnp.int32)
    edge_src = jnp.concatenate([nodes, nodes])
    edge_tgt = jnp.concatenate([(nodes + 1) % N, nodes])
    edge_index = jnp.stack([edge_src, edge_tgt])              # (2, 2N)

    out = jax.block_until_ready(gat_layer_forward(H_in, edge_index, W, A_src, A_tgt))

    assert out.shape == (N_h, N, D_out)
    assert bool(jnp.all(jnp.isfinite(out)))

    # loose tolerance: kernel uses bf16 MXU operands / bf16 exp / bf16 output
    ref = _reference(H_in, edge_index, W, A_src, A_tgt)
    max_err = float(jnp.max(jnp.abs(out - ref)))
    assert max_err < 0.25, f"max abs err {max_err}"

    print("KERNEL_OK")
</pallas_src>

<mosaic_0001>
module attributes {stable_mosaic.version = 11 : i64} {
  func.func @_gat_kernel(%arg0: i32, %arg1: i32, %arg2: memref<2x128x128xbf16, #tpu.memory_space<vmem>>, %arg3: memref<1x1x128xf32, #tpu.memory_space<vmem>>, %arg4: memref<1x128x1xf32, #tpu.memory_space<vmem>>, %arg5: memref<128x128xbf16, #tpu.memory_space<vmem>>, %arg6: memref<1x128x128xbf16, #tpu.memory_space<vmem>>) attributes {dimension_semantics = [#tpu.dimension_semantics<parallel>, #tpu.dimension_semantics<parallel>], iteration_bounds = array<i64: 1, 2>, scalar_prefetch = 0 : i64, scratch_operands = 0 : i64, tpu.core_type = #tpu.core_type<tc>, window_params = [{pipeline_mode = #tpu.pipeline_mode<synchronous>, transform_indices = @transform_0, window_bounds = array<i64: 2, 128, 128>}, {transform_indices = @transform_1, window_bounds = array<i64: 1, 1, 128>}, {transform_indices = @transform_2, window_bounds = array<i64: 1, 128, 1>}, {transform_indices = @transform_3, window_bounds = array<i64: 128, 128>}, {transform_indices = @transform_4, window_bounds = array<i64: 1, 128, 128>}]} {
    %0 = arith.index_cast %arg1 : i32 to index
    %c0 = arith.constant 0 : index
    %c0_0 = arith.constant 0 : index
    %1 = vector.load %arg2[%0, %c0, %c0_0] : memref<2x128x128xbf16, #tpu.memory_space<vmem>>, vector<1x128x128xbf16>
    %2 = vector.shape_cast %1 : vector<1x128x128xbf16> to vector<128x128xbf16>
    %c0_1 = arith.constant 0 : index
    %c0_2 = arith.constant 0 : index
    %c0_3 = arith.constant 0 : index
    %3 = vector.load %arg3[%c0_1, %c0_2, %c0_3] : memref<1x1x128xf32, #tpu.memory_space<vmem>>, vector<1x1x128xf32>
    %4 = vector.shape_cast %3 : vector<1x1x128xf32> to vector<1x128xf32>
    %c0_4 = arith.constant 0 : index
    %c0_5 = arith.constant 0 : index
    %c0_6 = arith.constant 0 : index
    %5 = vector.load %arg4[%c0_4, %c0_5, %c0_6] : memref<1x128x1xf32, #tpu.memory_space<vmem>>, vector<1x128x1xf32>
    %6 = vector.shape_cast %5 : vector<1x128x1xf32> to vector<128x1xf32>
    %7 = vector.broadcast %6 : vector<128x1xf32> to vector<128x128xf32>
    %8 = vector.broadcast %4 : vector<1x128xf32> to vector<128x128xf32>
    %9 = arith.addf %7, %8 : vector<128x128xf32>
    %cst = arith.constant 2.000000e-01 : f32
    %10 = vector.broadcast %cst : f32 to vector<128x128xf32>
    %11 = arith.mulf %10, %9 : vector<128x128xf32>
    %12 = arith.maximumf %9, %11 : vector<128x128xf32>
    %c0_7 = arith.constant 0 : index
    %c0_8 = arith.constant 0 : index
    %13 = vector.load %arg5[%c0_7, %c0_8] : memref<128x128xbf16, #tpu.memory_space<vmem>>, vector<128x128xbf16>
    %14 = arith.extf %13 : vector<128x128xbf16> to vector<128x128xf32>
    %15 = arith.addf %12, %14 : vector<128x128xf32>
    %cst_9 = arith.constant dense<0xFF800000> : vector<128xf32>
    %16 = vector.multi_reduction <maximumf>, %15, %cst_9 [1] : vector<128x128xf32> to vector<128xf32>
    %17 = vector.shape_cast %16 : vector<128xf32> to vector<128x1xf32>
    %cst_10 = arith.constant -1.000000e+04 : f32
    %18 = vector.broadcast %cst_10 : f32 to vector<128x1xf32>
    %19 = arith.maximumf %17, %18 : vector<128x1xf32>
    %20 = vector.broadcast %19 : vector<128x1xf32> to vector<128x128xf32>
    %21 = arith.subf %15, %20 : vector<128x128xf32>
    %22 = arith.truncf %21 : vector<128x128xf32> to vector<128x128xbf16>
    %23 = math.exp %22 : vector<128x128xbf16>
    %cst_11 = arith.constant dense<0.000000e+00> : vector<128x128xf32>
    %24 = tpu.matmul %23, %2, %cst_11 {dimension_numbers = #tpu.dot_dimension_numbers<[1], [0], [0], [1], [0, 0, 1, 1], [], []>} : vector<128x128xbf16>, vector<128x128xbf16>, vector<128x128xf32> -> vector<128x128xf32>
    %25 = vector.extract_strided_slice %24 {offsets = [0, 16], sizes = [128, 1], strides = [1, 1]} : vector<128x128xf32> to vector<128x1xf32>
    %cst_12 = arith.constant 9.99999968E-21 : f32
    %26 = vector.broadcast %cst_12 : f32 to vector<128x1xf32>
    %27 = arith.maximumf %25, %26 : vector<128x1xf32>
    %28 = tpu.reciprocal %27 {approx = true} : vector<128x1xf32> -> vector<128x1xf32>
    %29 = vector.broadcast %28 : vector<128x1xf32> to vector<128x128xf32>
    %30 = arith.mulf %24, %29 : vector<128x128xf32>
    %cst_13 = arith.constant 0.000000e+00 : f32
    %31 = vector.broadcast %cst_13 : f32 to vector<128x128xf32>
    %32 = arith.cmpf ogt, %30, %31 : vector<128x128xf32>
    %cst_14 = arith.constant 0.000000e+00 : f32
    %33 = vector.broadcast %cst_14 : f32 to vector<128x128xf32>
    %34 = arith.minimumf %30, %33 : vector<128x128xf32>
    %35 = math.exp %34 : vector<128x128xf32>
    %cst_15 = arith.constant 1.000000e+00 : f32
    %36 = vector.broadcast %cst_15 : f32 to vector<128x128xf32>
    %37 = arith.subf %35, %36 : vector<128x128xf32>
    %38 = arith.select %32, %30, %37 : vector<128x128xi1>, vector<128x128xf32>
    %39 = arith.truncf %38 : vector<128x128xf32> to vector<128x128xbf16>
    %c0_16 = arith.constant 0 : index
    %c0_17 = arith.constant 0 : index
    %c0_18 = arith.constant 0 : index
    %40 = vector.load %arg6[%c0_16, %c0_17, %c0_18] : memref<1x128x128xbf16, #tpu.memory_space<vmem>>, vector<1x128x128xbf16>
    %41 = vector.shape_cast %40 : vector<1x128x128xbf16> to vector<128x128xbf16>
    %42 = vector.shape_cast %39 : vector<128x128xbf16> to vector<1x128x128xbf16>
    tpu.vector_store %arg6[%c0_16, %c0_17, %c0_18], %42 {strides = array<i32>} : memref<1x128x128xbf16, #tpu.memory_space<vmem>>, vector<1x128x128xbf16>,
    return
  }
  func.func @transform_0(%arg0: i32, %arg1: i32) -> (i32, i32, i32) {
    %c0_i32 = arith.constant 0 : i32
    %c0_i32_0 = arith.constant 0 : i32
    %c0_i32_1 = arith.constant 0 : i32
    %c0_i32_2 = arith.constant 0 : i32
    return %c0_i32, %c0_i32_0, %c0_i32_1 : i32, i32, i32
  }
  func.func @transform_1(%arg0: i32, %arg1: i32) -> (i32, i32, i32) {
    %c0_i32 = arith.constant 0 : i32
    %c0_i32_0 = arith.constant 0 : i32
    %c0_i32_1 = arith.constant 0 : i32
    return %arg1, %c0_i32, %c0_i32_0 : i32, i32, i32
  }
  func.func @transform_2(%arg0: i32, %arg1: i32) -> (i32, i32, i32) {
    %c0_i32 = arith.constant 0 : i32
    %c0_i32_0 = arith.constant 0 : i32
    return %arg1, %arg0, %c0_i32 : i32, i32, i32
  }
  func.func @transform_3(%arg0: i32, %arg1: i32) -> (i32, i32) {
    %c0_i32 = arith.constant 0 : i32
    %c0_i32_0 = arith.constant 0 : i32
    return %arg0, %c0_i32 : i32, i32
  }
  func.func @transform_4(%arg0: i32, %arg1: i32) -> (i32, i32, i32) {
    %c0_i32 = arith.constant 0 : i32
    %c0_i32_0 = arith.constant 0 : i32
    return %arg1, %arg0, %c0_i32 : i32, i32, i32
  }
}

</mosaic_0001>

<llo_original>
// kernel: tpu_custom_call.1
$region0: #{tpu_custom_call.1}
  #allocation0 [shape = 'u32[]', space=smem, size = 0x4, offset = 0x4, fixed_abs, tag = 'smem constant byte address 0x4 - core index']
  #allocation1 [shape = 'u32[144,128]{1,0:T(1,128)}', space=vmem, size = 0x12000, scoped, tag = 'internal scratch']
  %s0 = inlined_call_operand.vmem [shape: bf16[2,128,128], index: 0, kind: input, shape index: {}]
  %s1 = inlined_call_operand.vmem [shape: f32[2,1,128], index: 1, kind: input, shape index: {}]
  %s2 = inlined_call_operand.vmem [shape: f32[2,128,1], index: 2, kind: input, shape index: {}]
  %s3 = inlined_call_operand.vmem [shape: bf16[128,128], index: 3, kind: input, shape index: {}]
  %s4 = inlined_call_operand.hbm [shape: bf16[2,128,128], index: 4, kind: output, shape index: {}]
  %s5 = sld [smem:[#allocation0]]
  $region49: #{tpu_custom_call.1} parent=0
    _
  %s7 = ssub.s32 1, %s5
  %s8 = scalar_select 0, %s7, %s5
  $region1: #{tpu_custom_call.1} parent=0
    #allocation2 [shape = 'u8[65536]{0}', space=vmem, size = 0x10000, scoped, tag = 'output window, operand 0']
    #allocation3 [shape = 's32[2]{0}', space=sflag, size = 0x8, scoped, tag = 'scoped memory for tpu_custom_call.1']
    %9 = vsyncpa [#allocation3], 0
    %s10 = scalar_lea.sflag [#allocation3], 1
    %11 = vsyncpa %s10, 0
    loop: start=0, step=1, limit=4
    $region2: #{tpu_custom_call.1} parent=1 // loop_pre_header
      _
    $region3: #{tpu_custom_call.1} parent=1 // loop_header
      %s13 = sphi 0, %s17
      %p14 = scmp.ge.s32.totalorder %s13, 4
      %s20 = sphi 0, %s32
      %s21 = sphi 0, %s28
      %s22 = sphi 0, %s20
      %s23 = sphi 0, %s21
      %s24 = sphi 0, %s22
      %s25 = sphi 0, %s23
      %s33 = sphi 0, %s33
      %s35 = sphi 0, %s33
      %s36 = sphi 0, %s35
      %s50 = sphi 0, %s36
      %s56 = sphi 0, %s58
      %s59 = sphi 0, %s56
      %s60 = sphi 0, %s59
      %s76 = sphi 0, %s60
      %s84 = sphi 0, %s86
      %s87 = sphi 0, %s84
      %s88 = sphi 0, %s87
      %s104 = sphi 0, %s88
      %s110 = sphi 0, %s112
      %s113 = sphi 0, %s110
      %s114 = sphi 0, %s113
      %s130 = sphi 0, %s114
      %s138 = sphi 0, %s140
      %s141 = sphi 0, %s138
      %s142 = sphi 0, %s141
      %s158 = sphi 0, %s142
    $region4: #{tpu_custom_call.1} parent=1 // loop_header_branch
      %16 = sbr.rel (%p14) target = $region8
    $region5: #{tpu_custom_call.1} parent=1 // loop_body
      %s18 = ssub.s32 %s13, 1
      %s19 = ssub.s32 %s13, 2
      %s26 = sadd.s32 1, %s21
      %p27 = scmp.ge.s32.totalorder %s26, 2
      %s28 = scalar_select %p27, 0, %s26
      %s29 = sadd.s32 1, %s20
      %s30 = scalar_select %p27, %s29, %s20
      %p31 = scmp.ge.s32.totalorder %s30, 1
      %s32 = scalar_select %p31, 0, %s30
      %s34 = sadd.s32 %s33, 1
      %p37 = scmp.eq.s32.totalorder %s13, 1
      %p38 = scmp.ne.s32.totalorder %s33, %s35
      %p39 = scmp.eq.s32.totalorder %s13, 0
      %p40 = por %p38, %p39
      %p41 = scmp.ne.s32.totalorder %s33, %s35
      %p42 = scmp.eq.s32.totalorder %s18, 1
      %p43 = por %p41, %p42
      %p44 = scmp.ne.s32.totalorder %s35, %s36
      %p45 = scmp.eq.s32.totalorder %s18, 0
      %p46 = por %p44, %p45
      %p47 = scmp.ne.s32.totalorder %s35, %s36
      %p48 = scmp.eq.s32.totalorder %s19, 1
      %p49 = por %p47, %p48
      %p51 = scmp.ne.s32.totalorder %s36, %s50
      %p52 = scmp.eq.s32.totalorder %s19, 0
      %p53 = por %p51, %p52
      %s54 = ssub.s32 %s21, %s28
      %p55 = scmp.eq.s32.totalorder %s54, 0
      %s57 = sadd.s32 %s56, 1
      %s58 = scalar_select %p55, %s56, %s57
      %p61 = pneg %p55
      %p62 = scmp.eq.s32.totalorder %s13, 1
      %p63 = por %p61, %p62
      %p64 = scmp.ne.s32.totalorder %s56, %s59
      %p65 = scmp.eq.s32.totalorder %s13, 0
      %p66 = por %p64, %p65
      %p67 = scmp.ne.s32.totalorder %s56, %s59
      %p68 = scmp.eq.s32.totalorder %s18, 1
      %p69 = por %p67, %p68
      %p70 = scmp.ne.s32.totalorder %s59, %s60
      %p71 = scmp.eq.s32.totalorder %s18, 0
      %p72 = por %p70, %p71
      %p73 = scmp.ne.s32.totalorder %s59, %s60
      %p74 = scmp.eq.s32.totalorder %s19, 1
      %p75 = por %p73, %p74
      %p77 = scmp.ne.s32.totalorder %s60, %s76
      %p78 = scmp.eq.s32.totalorder %s19, 0
      %p79 = por %p77, %p78
      %s80 = ssub.s32 %s21, %s28
      %s81 = ssub.s32 %s20, %s32
      %s82 = sor.u32 %s80, %s81
      %p83 = scmp.eq.s32.totalorder %s82, 0
      %s85 = sadd.s32 %s84, 1
      %s86 = scalar_select %p83, %s84, %s85
      %p89 = pneg %p83
      %p90 = scmp.eq.s32.totalorder %s13, 1
      %p91 = por %p89, %p90
      %p92 = scmp.ne.s32.totalorder %s84, %s87
      %p93 = scmp.eq.s32.totalorder %s13, 0
      %p94 = por %p92, %p93
      %p95 = scmp.ne.s32.totalorder %s84, %s87
      %p96 = scmp.eq.s32.totalorder %s18, 1
      %p97 = por %p95, %p96
      %p98 = scmp.ne.s32.totalorder %s87, %s88
      %p99 = scmp.eq.s32.totalorder %s18, 0
      %p100 = por %p98, %p99
      %p101 = scmp.ne.s32.totalorder %s87, %s88
      %p102 = scmp.eq.s32.totalorder %s19, 1
      %p103 = por %p101, %p102
      %p105 = scmp.ne.s32.totalorder %s88, %s104
      %p106 = scmp.eq.s32.totalorder %s19, 0
      %p107 = por %p105, %p106
      %s108 = ssub.s32 %s20, %s32
      %p109 = scmp.eq.s32.totalorder %s108, 0
      %s111 = sadd.s32 %s110, 1
      %s112 = scalar_select %p109, %s110, %s111
      %p115 = pneg %p109
      %p116 = scmp.eq.s32.totalorder %s13, 1
      %p117 = por %p115, %p116
      %p118 = scmp.ne.s32.totalorder %s110, %s113
      %p119 = scmp.eq.s32.totalorder %s13, 0
      %p120 = por %p118, %p119
      %p121 = scmp.ne.s32.totalorder %s110, %s113
      %p122 = scmp.eq.s32.totalorder %s18, 1
      %p123 = por %p121, %p122
      %p124 = scmp.ne.s32.totalorder %s113, %s114
      %p125 = scmp.eq.s32.totalorder %s18, 0
      %p126 = por %p124, %p125
      %p127 = scmp.ne.s32.totalorder %s113, %s114
      %p128 = scmp.eq.s32.totalorder %s19, 1
      %p129 = por %p127, %p128
      %p131 = scmp.ne.s32.totalorder %s114, %s130
      %p132 = scmp.eq.s32.totalorder %s19, 0
      %p133 = por %p131, %p132
      %s134 = ssub.s32 %s21, %s28
      %s135 = ssub.s32 %s20, %s32
      %s136 = sor.u32 %s134, %s135
      %p137 = scmp.eq.s32.totalorder %s136, 0
      %s139 = sadd.s32 %s138, 1
      %s140 = scalar_select %p137, %s138, %s139
      %p143 = pneg %p137
      %p144 = scmp.eq.s32.totalorder %s13, 1
      %p145 = por %p143, %p144
      %p146 = scmp.ne.s32.totalorder %s138, %s141
      %p147 = scmp.eq.s32.totalorder %s13, 0
      %p148 = por %p146, %p147
      %p149 = scmp.ne.s32.totalorder %s138, %s141
      %p150 = scmp.eq.s32.totalorder %s18, 1
      %p151 = por %p149, %p150
      %p152 = scmp.ne.s32.totalorder %s141, %s142
      %p153 = scmp.eq.s32.totalorder %s18, 0
      %p154 = por %p152, %p153
      %p155 = scmp.ne.s32.totalorder %s141, %s142
      %p156 = scmp.eq.s32.totalorder %s19, 1
      %p157 = por %p155, %p156
      %p159 = scmp.ne.s32.totalorder %s142, %s158
      %p160 = scmp.eq.s32.totalorder %s19, 0
      %p161 = por %p159, %p160
      %p162 = scmp.le.s32.totalorder 1, %s13
      %p163 = scmp.lt.s32.totalorder %s13, 3
      %p164 = pnand %p162, %p163
      %p165 = pneg %p164
      // Predicated region
      $region9: #{tpu_custom_call.1} parent=5 // pred_check
        _
      $region10: #{tpu_custom_call.1} parent=5 // pred_check_branch
        %167 = sbr.rel (%p164) target = $region12
      $region11: #{tpu_custom_call.1} parent=5 // pred_region
        %s168 = ssub.s32 %s13, 1
        // Predicated region
        $region13: #{tpu_custom_call.1} parent=11 // pred_check
          %p169 = pneg %p46
        $region14: #{tpu_custom_call.1} parent=11 // pred_check_branch
          %171 = sbr.rel (%p169) target = $region16
        $region15: #{tpu_custom_call.1} parent=11 // pred_region
          _
        $region16: #{tpu_custom_call.1} parent=11 // pred_fallthru
          _
        // Predicated region
        $region17: #{tpu_custom_call.1} parent=11 // pred_check
          %p172 = pneg %p126
        $region18: #{tpu_custom_call.1} parent=11 // pred_check_branch
          %174 = sbr.rel (%p172) target = $region20
        $region19: #{tpu_custom_call.1} parent=11 // pred_region
          %s175 = smul.u32 16, %s22
          %p176 = scmp.lt.s32.totalorder %s175, 15
          %s177 = scalar_select %p176, %s175, 15
          %s178 = smul.addr %s177, 4
          %s179 = scalar_lea.vmem %s3, %s178
          %s180 = smul.u32 16, %s22
        $region20: #{tpu_custom_call.1} parent=11 // pred_fallthru
          _
      $region12: #{tpu_custom_call.1} parent=5 // pred_fallthru
        _
      %p181 = scmp.lt.s32.totalorder %s13, 2
      // Predicated region
      $region21: #{tpu_custom_call.1} parent=5 // pred_check
        %p182 = pneg %p181
      $region22: #{tpu_custom_call.1} parent=5 // pred_check_branch
        %184 = sbr.rel (%p182) target = $region24
      $region23: #{tpu_custom_call.1} parent=5 // pred_region
        // Predicated region
        $region25: #{tpu_custom_call.1} parent=23 // pred_check
          %p185 = pneg %p66
        $region26: #{tpu_custom_call.1} parent=23 // pred_check_branch
          %187 = sbr.rel (%p185) target = $region28
        $region27: #{tpu_custom_call.1} parent=23 // pred_region
          %p188 = scmp.lt.s32.totalorder %s21, 1
          %s189 = scalar_select %p188, %s21, 1
          %s190 = scalar_lea.vmem %s1, %s189
        $region28: #{tpu_custom_call.1} parent=23 // pred_fallthru
          _
        // Predicated region
        $region29: #{tpu_custom_call.1} parent=23 // pred_check
          %p191 = pneg %p94
        $region30: #{tpu_custom_call.1} parent=23 // pred_check_branch
          %193 = sbr.rel (%p191) target = $region32
        $region31: #{tpu_custom_call.1} parent=23 // pred_region
          %s194 = smul.u32 16, %s20
          %p195 = scmp.lt.s32.totalorder %s21, 1
          %s196 = scalar_select %p195, %s21, 1
          %p197 = scmp.lt.s32.totalorder %s194, 15
          %s198 = scalar_select %p197, %s194, 15
          %s199 = smul.addr %s196, 16
          %s200 = sadd.s32 %s198, %s199
          %s201 = smul.addr %s200, 8
          %s202 = scalar_lea.vmem %s2, %s201
          %s203 = smul.u32 16, %s20
        $region32: #{tpu_custom_call.1} parent=23 // pred_fallthru
          _
      $region24: #{tpu_custom_call.1} parent=5 // pred_fallthru
        _
      %p204 = scmp.le.s32.totalorder 1, %s13
      %p205 = scmp.lt.s32.totalorder %s13, 3
      %p206 = pnand %p204, %p205
      %p207 = pneg %p206
      // Predicated region
      $region33: #{tpu_custom_call.1} parent=5 // pred_check
        _
      $region34: #{tpu_custom_call.1} parent=5 // pred_check_branch
        %209 = sbr.rel (%p206) target = $region36
      $region35: #{tpu_custom_call.1} parent=5 // pred_region
        %s210 = ssub.s32 %s13, 1
        %p211 = pneg %p46
        %p212 = pneg %p43
        %p213 = scmp.lt.s32.totalorder %s23, 1
        %s214 = scalar_select %p213, %s23, 1
        %s215 = scalar_lea.vmem %s1, %s214
        %p216 = pneg %p72
        %p217 = pneg %p69
        %s218 = smul.u32 16, %s22
        %p219 = scmp.lt.s32.totalorder %s23, 1
        %s220 = scalar_select %p219, %s23, 1
        %p221 = scmp.lt.s32.totalorder %s218, 15
        %s222 = scalar_select %p221, %s218, 15
        %s223 = smul.addr %s220, 16
        %s224 = sadd.s32 %s222, %s223
        %s225 = smul.addr %s224, 8
        %s226 = scalar_lea.vmem %s2, %s225
        %p227 = pneg %p100
        %p228 = pneg %p97
        %s229 = smul.u32 16, %s22
        %p230 = scmp.lt.s32.totalorder %s229, 15
        %s231 = scalar_select %p230, %s229, 15
        %s232 = smul.addr %s231, 4
        %s233 = scalar_lea.vmem %s3, %s232
        %p234 = pneg %p126
        %p235 = pneg %p123
        %p236 = pneg %p154
        %p237 = pneg %p151
        %s238 = sand.u32 %s141, 1
        %s239 = scalar_lea.sflag [#allocation3], %s238
        %s240 = sand.u32 %s141, 1
        %s241 = smul.addr %s240, 64
        %s242 = scalar_lea.vmem [#allocation2], %s241
        %p243 = scmp.lt.s32.totalorder %s23, 1
        %s244 = scalar_select %p243, %s23, 1
        %s245 = scalar_lea.vmem %s1, %s244
        %s246 = smul.u32 16, %s22
        %p247 = scmp.lt.s32.totalorder %s23, 1
        %s248 = scalar_select %p247, %s23, 1
        %p249 = scmp.lt.s32.totalorder %s246, 15
        %s250 = scalar_select %p249, %s246, 15
        %s251 = smul.addr %s248, 16
        %s252 = sadd.s32 %s250, %s251
        %s253 = smul.addr %s252, 8
        %s254 = scalar_lea.vmem %s2, %s253
        %s255 = smul.u32 16, %s22
        %s256 = smul.u32 16, %s22
        %p257 = scmp.lt.s32.totalorder %s256, 15
        %s258 = scalar_select %p257, %s256, 15
        %s259 = smul.addr %s258, 4
        %s260 = scalar_lea.vmem %s3, %s259
        %s261 = smul.u32 16, %s22
        %s262 = smul.u32 16, %s22
        %s264 = smul.u32 %s23, 16
        %s265 = smul.addr %s264, 4
        %s266 = scalar_lea.vmem %s0, %s265
        %v267 = vld [vmem:[%s266] sm:$0xf]
        %v268 = vld [vmem:[%s266 + $0x4] sm:$0xf]
        %v269 = vld [vmem:[%s266 + $0x8] sm:$0xf]
        %v270 = vld [vmem:[%s266 + $0xc] sm:$0xf]
        %v271 = vld [vmem:[%s266 + $0x10] sm:$0xf]
        %v272 = vld [vmem:[%s266 + $0x14] sm:$0xf]
        %v273 = vld [vmem:[%s266 + $0x18] sm:$0xf]
        %v274 = vld [vmem:[%s266 + $0x1c] sm:$0xf]
        %v275 = vld [vmem:[%s266 + $0x20] sm:$0xf]
        %v276 = vld [vmem:[%s266 + $0x24] sm:$0xf]
        %v277 = vld [vmem:[%s266 + $0x28] sm:$0xf]
        %v278 = vld [vmem:[%s266 + $0x2c] sm:$0xf]
        %v279 = vld [vmem:[%s266 + $0x30] sm:$0xf]
        %v280 = vld [vmem:[%s266 + $0x34] sm:$0xf]
        %v281 = vld [vmem:[%s266 + $0x38] sm:$0xf]
        %v282 = vld [vmem:[%s266 + $0x3c] sm:$0xf]
        %v283 = vld [vmem:[%s245] sm:$0x1]
        %v284 = vld [vmem:[%s254] sm:$0xff]
        %v285 = vld [vmem:[%s254 + $0x8] sm:$0xff]
        %v286 = vld [vmem:[%s254 + $0x10] sm:$0xff]
        %v287 = vld [vmem:[%s254 + $0x18] sm:$0xff]
        %v288 = vld [vmem:[%s254 + $0x20] sm:$0xff]
        %v289 = vld [vmem:[%s254 + $0x28] sm:$0xff]
        %v290 = vld [vmem:[%s254 + $0x30] sm:$0xff]
        %v291 = vld [vmem:[%s254 + $0x38] sm:$0xff]
        %v292 = vld [vmem:[%s254 + $0x40] sm:$0xff]
        %v293 = vld [vmem:[%s254 + $0x48] sm:$0xff]
        %v294 = vld [vmem:[%s254 + $0x50] sm:$0xff]
        %v295 = vld [vmem:[%s254 + $0x58] sm:$0xff]
        %v296 = vld [vmem:[%s254 + $0x60] sm:$0xff]
        %v297 = vld [vmem:[%s254 + $0x68] sm:$0xff]
        %v298 = vld [vmem:[%s254 + $0x70] sm:$0xff]
        %v299 = vld [vmem:[%s254 + $0x78] sm:$0xff]
        %301 = vset.pattern.permute.xlu0 0
        %302 = vperm.xlu0 %301, %v284
        %v303 = vpop.permute.xlu0 %302
        %306 = vset.pattern.permute.xlu0 0
        %307 = vperm.xlu0 %306, %v285
        %v308 = vpop.permute.xlu0 %307
        %311 = vset.pattern.permute.xlu0 0
        %312 = vperm.xlu0 %311, %v286
        %v313 = vpop.permute.xlu0 %312
        %316 = vset.pattern.permute.xlu0 0
        %317 = vperm.xlu0 %316, %v287
        %v318 = vpop.permute.xlu0 %317
        %321 = vset.pattern.permute.xlu0 0
        %322 = vperm.xlu0 %321, %v288
        %v323 = vpop.permute.xlu0 %322
        %326 = vset.pattern.permute.xlu0 0
        %327 = vperm.xlu0 %326, %v289
        %v328 = vpop.permute.xlu0 %327
        %331 = vset.pattern.permute.xlu0 0
        %332 = vperm.xlu0 %331, %v290
        %v333 = vpop.permute.xlu0 %332
        %336 = vset.pattern.permute.xlu0 0
        %337 = vperm.xlu0 %336, %v291
        %v338 = vpop.permute.xlu0 %337
        %341 = vset.pattern.permute.xlu0 0
        %342 = vperm.xlu0 %341, %v292
        %v343 = vpop.permute.xlu0 %342
        %346 = vset.pattern.permute.xlu0 0
        %347 = vperm.xlu0 %346, %v293
        %v348 = vpop.permute.xlu0 %347
        %351 = vset.pattern.permute.xlu0 0
        %352 = vperm.xlu0 %351, %v294
        %v353 = vpop.permute.xlu0 %352
        %356 = vset.pattern.permute.xlu0 0
        %357 = vperm.xlu0 %356, %v295
        %v358 = vpop.permute.xlu0 %357
        %361 = vset.pattern.permute.xlu0 0
        %362 = vperm.xlu0 %361, %v296
        %v363 = vpop.permute.xlu0 %362
        %366 = vset.pattern.permute.xlu0 0
        %367 = vperm.xlu0 %366, %v297
        %v368 = vpop.permute.xlu0 %367
        %371 = vset.pattern.permute.xlu0 0
        %372 = vperm.xlu0 %371, %v298
        %v373 = vpop.permute.xlu0 %372
        %376 = vset.pattern.permute.xlu0 0
        %377 = vperm.xlu0 %376, %v299
        %v378 = vpop.permute.xlu0 %377
        %v381 = vlaneseq
        %v382 = vshrl.u32 %v381, 7
        %v383 = vsub.s32 0, %v382
        %v384 = vrot.slane %v283, %v383
        %v386 = vadd.f32 %v303, %v384
        %v387 = vadd.f32 %v308, %v384
        %v388 = vadd.f32 %v313, %v384
        %v389 = vadd.f32 %v318, %v384
        %v390 = vadd.f32 %v323, %v384
        %v391 = vadd.f32 %v328, %v384
        %v392 = vadd.f32 %v333, %v384
        %v393 = vadd.f32 %v338, %v384
        %v394 = vadd.f32 %v343, %v384
        %v395 = vadd.f32 %v348, %v384
        %v396 = vadd.f32 %v353, %v384
        %v397 = vadd.f32 %v358, %v384
        %v398 = vadd.f32 %v363, %v384
        %v399 = vadd.f32 %v368, %v384
        %v400 = vadd.f32 %v373, %v384
        %v401 = vadd.f32 %v378, %v384
        %v402 = vmul.f32 %v386, 0.2
        %v403 = vmul.f32 %v387, 0.2
        %v404 = vmul.f32 %v388, 0.2
        %v405 = vmul.f32 %v389, 0.2
        %v406 = vmul.f32 %v390, 0.2
        %v407 = vmul.f32 %v391, 0.2
        %v408 = vmul.f32 %v392, 0.2
        %v409 = vmul.f32 %v393, 0.2
        %v410 = vmul.f32 %v394, 0.2
        %v411 = vmul.f32 %v395, 0.2
        %v412 = vmul.f32 %v396, 0.2
        %v413 = vmul.f32 %v397, 0.2
        %v414 = vmul.f32 %v398, 0.2
        %v415 = vmul.f32 %v399, 0.2
        %v416 = vmul.f32 %v400, 0.2
        %v417 = vmul.f32 %v401, 0.2
        %v418 = vmax.f32 %v386, %v402
        %v419 = vmax.f32 %v387, %v403
        %v420 = vmax.f32 %v388, %v404
        %v421 = vmax.f32 %v389, %v405
        %v422 = vmax.f32 %v390, %v406
        %v423 = vmax.f32 %v391, %v407
        %v424 = vmax.f32 %v392, %v408
        %v425 = vmax.f32 %v393, %v409
        %v426 = vmax.f32 %v394, %v410
        %v427 = vmax.f32 %v395, %v411
        %v428 = vmax.f32 %v396, %v412
        %v429 = vmax.f32 %v397, %v413
        %v430 = vmax.f32 %v398, %v414
        %v431 = vmax.f32 %v399, %v415
        %v432 = vmax.f32 %v400, %v416
        %v433 = vmax.f32 %v401, %v417
        %v434 = vld [vmem:[%s260] sm:$0xf]
        %v435 = vld [vmem:[%s260 + $0x4] sm:$0xf]
        %v436 = vld [vmem:[%s260 + $0x8] sm:$0xf]
        %v437 = vld [vmem:[%s260 + $0xc] sm:$0xf]
        %v438 = vld [vmem:[%s260 + $0x10] sm:$0xf]
        %v439 = vld [vmem:[%s260 + $0x14] sm:$0xf]
        %v440 = vld [vmem:[%s260 + $0x18] sm:$0xf]
        %v441 = vld [vmem:[%s260 + $0x1c] sm:$0xf]
        %v442 = vld [vmem:[%s260 + $0x20] sm:$0xf]
        %v443 = vld [vmem:[%s260 + $0x24] sm:$0xf]
        %v444 = vld [vmem:[%s260 + $0x28] sm:$0xf]
        %v445 = vld [vmem:[%s260 + $0x2c] sm:$0xf]
        %v446 = vld [vmem:[%s260 + $0x30] sm:$0xf]
        %v447 = vld [vmem:[%s260 + $0x34] sm:$0xf]
        %v448 = vld [vmem:[%s260 + $0x38] sm:$0xf]
        %v449 = vld [vmem:[%s260 + $0x3c] sm:$0xf]
        %v450 = vunpack.c.l.bf16 %v434
        %v451 = vunpack.c.l.bf16 %v435
        %v452 = vunpack.c.l.bf16 %v436
        %v453 = vunpack.c.l.bf16 %v437
        %v454 = vunpack.c.l.bf16 %v438
        %v455 = vunpack.c.l.bf16 %v439
        %v456 = vunpack.c.l.bf16 %v440
        %v457 = vunpack.c.l.bf16 %v441
        %v458 = vunpack.c.l.bf16 %v442
        %v459 = vunpack.c.l.bf16 %v443
        %v460 = vunpack.c.l.bf16 %v444
        %v461 = vunpack.c.l.bf16 %v445
        %v462 = vunpack.c.l.bf16 %v446
        %v463 = vunpack.c.l.bf16 %v447
        %v464 = vunpack.c.l.bf16 %v448
        %v465 = vunpack.c.l.bf16 %v449
        %v466 = vadd.f32 %v418, %v450
        %v467 = vadd.f32 %v419, %v451
        %v468 = vadd.f32 %v420, %v452
        %v469 = vadd.f32 %v421, %v453
        %v470 = vadd.f32 %v422, %v454
        %v471 = vadd.f32 %v423, %v455
        %v472 = vadd.f32 %v424, %v456
        %v473 = vadd.f32 %v425, %v457
        %v474 = vadd.f32 %v426, %v458
        %v475 = vadd.f32 %v427, %v459
        %v476 = vadd.f32 %v428, %v460
        %v477 = vadd.f32 %v429, %v461
        %v478 = vadd.f32 %v430, %v462
        %v479 = vadd.f32 %v431, %v463
        %v480 = vadd.f32 %v432, %v464
        %v481 = vadd.f32 %v433, %v465
        %482 = vmax.xlane.f32.xlu0 %v466
        %v483 = vpop.xlane.xlu0 %482
        %484 = vmax.xlane.f32.xlu0 %v467
        %v485 = vpop.xlane.xlu0 %484
        %486 = vmax.xlane.f32.xlu0 %v468
        %v487 = vpop.xlane.xlu0 %486
        %488 = vmax.xlane.f32.xlu0 %v469
        %v489 = vpop.xlane.xlu0 %488
        %490 = vmax.xlane.f32.xlu0 %v470
        %v491 = vpop.xlane.xlu0 %490
        %492 = vmax.xlane.f32.xlu0 %v471
        %v493 = vpop.xlane.xlu0 %492
        %494 = vmax.xlane.f32.xlu0 %v472
        %v495 = vpop.xlane.xlu0 %494
        %496 = vmax.xlane.f32.xlu0 %v473
        %v497 = vpop.xlane.xlu0 %496
        %498 = vmax.xlane.f32.xlu0 %v474
        %v499 = vpop.xlane.xlu0 %498
        %500 = vmax.xlane.f32.xlu0 %v475
        %v501 = vpop.xlane.xlu0 %500
        %502 = vmax.xlane.f32.xlu0 %v476
        %v503 = vpop.xlane.xlu0 %502
        %504 = vmax.xlane.f32.xlu0 %v477
        %v505 = vpop.xlane.xlu0 %504
        %506 = vmax.xlane.f32.xlu0 %v478
        %v507 = vpop.xlane.xlu0 %506
        %508 = vmax.xlane.f32.xlu0 %v479
        %v509 = vpop.xlane.xlu0 %508
        %510 = vmax.xlane.f32.xlu0 %v480
        %v511 = vpop.xlane.xlu0 %510
        %512 = vmax.xlane.f32.xlu0 %v481
        %v513 = vpop.xlane.xlu0 %512
        %v514 = vmax.f32 %v483, -10000.0
        %v515 = vmax.f32 %v485, -10000.0
        %v516 = vmax.f32 %v487, -10000.0
        %v517 = vmax.f32 %v489, -10000.0
        %v518 = vmax.f32 %v491, -10000.0
        %v519 = vmax.f32 %v493, -10000.0
        %v520 = vmax.f32 %v495, -10000.0
        %v521 = vmax.f32 %v497, -10000.0
        %v522 = vmax.f32 %v499, -10000.0
        %v523 = vmax.f32 %v501, -10000.0
        %v524 = vmax.f32 %v503, -10000.0
        %v525 = vmax.f32 %v505, -10000.0
        %v526 = vmax.f32 %v507, -10000.0
        %v527 = vmax.f32 %v509, -10000.0
        %v528 = vmax.f32 %v511, -10000.0
        %v529 = vmax.f32 %v513, -10000.0
        %v530 = vsub.f32 %v466, %v514
        %v531 = vsub.f32 %v467, %v515
        %v532 = vsub.f32 %v468, %v516
        %v533 = vsub.f32 %v469, %v517
        %v534 = vsub.f32 %v470, %v518
        %v535 = vsub.f32 %v471, %v519
        %v536 = vsub.f32 %v472, %v520
        %v537 = vsub.f32 %v473, %v521
        %v538 = vsub.f32 %v474, %v522
        %v539 = vsub.f32 %v475, %v523
        %v540 = vsub.f32 %v476, %v524
        %v541 = vsub.f32 %v477, %v525
        %v542 = vsub.f32 %v478, %v526
        %v543 = vsub.f32 %v479, %v527
        %v544 = vsub.f32 %v480, %v528
        %v545 = vsub.f32 %v481, %v529
        %v546 = vpack.c.bf16 %v531, %v530
        %v547 = vpack.c.bf16 %v533, %v532
        %v548 = vpack.c.bf16 %v535, %v534
        %v549 = vpack.c.bf16 %v537, %v536
        %v550 = vpack.c.bf16 %v539, %v538
        %v551 = vpack.c.bf16 %v541, %v540
        %v552 = vpack.c.bf16 %v543, %v542
        %v553 = vpack.c.bf16 %v545, %v544
        %v555 = vmul.bf16 %v546, 1069105081
        %v556 = vpow.bf16.pop %v555
        %v558 = vmul.bf16 %v547, 1069105081
        %v559 = vpow.bf16.pop %v558
        %v561 = vmul.bf16 %v548, 1069105081
        %v562 = vpow.bf16.pop %v561
        %v564 = vmul.bf16 %v549, 1069105081
        %v565 = vpow.bf16.pop %v564
        %v567 = vmul.bf16 %v550, 1069105081
        %v568 = vpow.bf16.pop %v567
        %v570 = vmul.bf16 %v551, 1069105081
        %v571 = vpow.bf16.pop %v570
        %v573 = vmul.bf16 %v552, 1069105081
        %v574 = vpow.bf16.pop %v573
        %v576 = vmul.bf16 %v553, 1069105081
        %v577 = vpow.bf16.pop %v576
        %v594 = vunpack.c.l.b16 %v267
        %v595 = vunpack.c.l.b16 %v268
        %v596 = vunpack.c.l.b16 %v269
        %v597 = vunpack.c.l.b16 %v270
        %v598 = vunpack.c.l.b16 %v271
        %v599 = vunpack.c.l.b16 %v272
        %v600 = vunpack.c.l.b16 %v273
        %v601 = vunpack.c.l.b16 %v274
        %v602 = vunpack.c.l.b16 %v275
        %v603 = vunpack.c.l.b16 %v276
        %v604 = vunpack.c.l.b16 %v277
        %v605 = vunpack.c.l.b16 %v278
        %v606 = vunpack.c.l.b16 %v279
        %v607 = vunpack.c.l.b16 %v280
        %v608 = vunpack.c.l.b16 %v281
        %v609 = vunpack.c.l.b16 %v282
        %v610 = vpack.c.b16 %v595, %v594
        %v611 = vpack.c.b16 %v597, %v596
        %v612 = vpack.c.b16 %v599, %v598
        %v613 = vpack.c.b16 %v601, %v600
        %v614 = vpack.c.b16 %v603, %v602
        %v615 = vpack.c.b16 %v605, %v604
        %v616 = vpack.c.b16 %v607, %v606
        %v617 = vpack.c.b16 %v609, %v608
        %626 = vmatprep.subr.bf16.mxu0 0
        %627 = vmatpush1.bf16.msra.mxu0 %v610
        %628 = vmatprep.subr.bf16.mxu0 0
        %629 = vmatpush1.bf16.msra.mxu0 %v611
        %630 = vmatprep.subr.bf16.mxu0 0
        %631 = vmatpush1.bf16.msra.mxu0 %v612
        %632 = vmatprep.subr.bf16.mxu0 0
        %633 = vmatpush1.bf16.msra.mxu0 %v613
        %634 = vmatprep.subr.bf16.mxu0 0
        %635 = vmatpush1.bf16.msra.mxu0 %v614
        %636 = vmatprep.subr.bf16.mxu0 0
        %637 = vmatpush1.bf16.msra.mxu0 %v615
        %638 = vmatprep.subr.bf16.mxu0 0
        %639 = vmatpush1.bf16.msra.mxu0 %v616
        %640 = vmatprep.subr.bf16.mxu0 0
        %641 = vmatpush1.bf16.msra.mxu0 %v617
        %642 = vmatprep.subr.bf16.mxu0 0
        %643 = vmatpush1.bf16.msra.mxu0 0
        %644 = vmatprep.subr.bf16.mxu0 0
        %645 = vmatpush1.bf16.msra.mxu0 0
        %646 = vmatprep.subr.bf16.mxu0 0
        %647 = vmatpush1.bf16.msra.mxu0 0
        %648 = vmatprep.subr.bf16.mxu0 0
        %649 = vmatpush1.bf16.msra.mxu0 0
        %650 = vmatprep.subr.bf16.mxu0 0
        %651 = vmatpush1.bf16.msra.mxu0 0
        %652 = vmatprep.subr.bf16.mxu0 0
        %653 = vmatpush1.bf16.msra.mxu0 0
        %654 = vmatprep.subr.bf16.mxu0 0
        %655 = vmatpush1.bf16.msra.mxu0 0
        %656 = vmatprep.subr.bf16.mxu0 0
        %657 = vmatpush1.bf16.msra.mxu0 0
        %658 = vmatprep.mubr.bf16.mxu0 0
        %659 = vmatmul.mubr.bf16.gmra.mrb[0].mxu0 %v556
        %v660 = vpop.f32.mrb[0].mxu0
        %v661 = vadd.f32 0.0, %v660
        %v662 = vpop.f32.mrb[0].mxu0
        %v663 = vpop.f32.mrb[0].mxu0
        %v664 = vadd.f32 0.0, %v663
        %v665 = vpop.f32.mrb[0].mxu0
        %666 = vmatprep.mubr.bf16.mxu0 0
        %667 = vmatmul.mubr.bf16.gmra.mrb[0].mxu0 %v559
        %v668 = vpop.f32.mrb[0].mxu0
        %v669 = vadd.f32 0.0, %v668
        %v670 = vpop.f32.mrb[0].mxu0
        %v671 = vpop.f32.mrb[0].mxu0
        %v672 = vadd.f32 0.0, %v671
        %v673 = vpop.f32.mrb[0].mxu0
        %674 = vmatprep.mubr.bf16.mxu0 0
        %675 = vmatmul.mubr.bf16.gmra.mrb[0].mxu0 %v562
        %v676 = vpop.f32.mrb[0].mxu0
        %v677 = vadd.f32 0.0, %v676
        %v678 = vpop.f32.mrb[0].mxu0
        %v679 = vpop.f32.mrb[0].mxu0
        %v680 = vadd.f32 0.0, %v679
        %v681 = vpop.f32.mrb[0].mxu0
        %682 = vmatprep.mubr.bf16.mxu0 0
        %683 = vmatmul.mubr.bf16.gmra.mrb[0].mxu0 %v565
        %v684 = vpop.f32.mrb[0].mxu0
        %v685 = vadd.f32 0.0, %v684
        %v686 = vpop.f32.mrb[0].mxu0
        %v687 = vpop.f32.mrb[0].mxu0
        %v688 = vadd.f32 0.0, %v687
        %v689 = vpop.f32.mrb[0].mxu0
        %690 = vmatprep.mubr.bf16.mxu0 0
        %691 = vmatmul.mubr.bf16.gmra.mrb[0].mxu0 %v568
        %v692 = vpop.f32.mrb[0].mxu0
        %v693 = vadd.f32 0.0, %v692
        %v694 = vpop.f32.mrb[0].mxu0
        %v695 = vpop.f32.mrb[0].mxu0
        %v696 = vadd.f32 0.0, %v695
        %v697 = vpop.f32.mrb[0].mxu0
        %698 = vmatprep.mubr.bf16.mxu0 0
        %699 = vmatmul.mubr.bf16.gmra.mrb[0].mxu0 %v571
        %v700 = vpop.f32.mrb[0].mxu0
        %v701 = vadd.f32 0.0, %v700
        %v702 = vpop.f32.mrb[0].mxu0
        %v703 = vpop.f32.mrb[0].mxu0
        %v704 = vadd.f32 0.0, %v703
        %v705 = vpop.f32.mrb[0].mxu0
        %706 = vmatprep.mubr.bf16.mxu0 0
        %707 = vmatmul.mubr.bf16.gmra.mrb[0].mxu0 %v574
        %v708 = vpop.f32.mrb[0].mxu0
        %v709 = vadd.f32 0.0, %v708
        %v710 = vpop.f32.mrb[0].mxu0
        %v711 = vpop.f32.mrb[0].mxu0
        %v712 = vadd.f32 0.0, %v711
        %v713 = vpop.f32.mrb[0].mxu0
        %714 = vmatprep.mubr.bf16.mxu0 0
        %715 = vmatmul.mubr.bf16.gmra.mrb[0].mxu0 %v577
        %v716 = vpop.f32.mrb[0].mxu0
        %v717 = vadd.f32 0.0, %v716
        %v718 = vpop.f32.mrb[0].mxu0
        %v719 = vpop.f32.mrb[0].mxu0
        %v720 = vadd.f32 0.0, %v719
        %v721 = vpop.f32.mrb[0].mxu0
        %722 = vdwg.mxu0
        %v723 = vmax.f32 %v661, 1e-20
        %v724 = vmax.f32 %v664, 1e-20
        %v725 = vmax.f32 %v669, 1e-20
        %v726 = vmax.f32 %v672, 1e-20
        %v727 = vmax.f32 %v677, 1e-20
        %v728 = vmax.f32 %v680, 1e-20
        %v729 = vmax.f32 %v685, 1e-20
        %v730 = vmax.f32 %v688, 1e-20
        %v731 = vmax.f32 %v693, 1e-20
        %v732 = vmax.f32 %v696, 1e-20
        %v733 = vmax.f32 %v701, 1e-20
        %v734 = vmax.f32 %v704, 1e-20
        %v735 = vmax.f32 %v709, 1e-20
        %v736 = vmax.f32 %v712, 1e-20
        %v737 = vmax.f32 %v717, 1e-20
        %v738 = vmax.f32 %v720, 1e-20
        %v739 = vrcp.pop %v723
        %v740 = vrcp.pop %v724
        %v741 = vrcp.pop %v725
        %v742 = vrcp.pop %v726
        %v743 = vrcp.pop %v727
        %v744 = vrcp.pop %v728
        %v745 = vrcp.pop %v729
        %v746 = vrcp.pop %v730
        %v747 = vrcp.pop %v731
        %v748 = vrcp.pop %v732
        %v749 = vrcp.pop %v733
        %v750 = vrcp.pop %v734
        %v751 = vrcp.pop %v735
        %v752 = vrcp.pop %v736
        %v753 = vrcp.pop %v737
        %v754 = vrcp.pop %v738
        %756 = vset.pattern.permute.xlu0 16
        %757 = vperm.xlu0 %756, %v739
        %v758 = vpop.permute.xlu0 %757
        %761 = vset.pattern.permute.xlu0 16
        %762 = vperm.xlu0 %761, %v740
        %v763 = vpop.permute.xlu0 %762
        %766 = vset.pattern.permute.xlu0 16
        %767 = vperm.xlu0 %766, %v741
        %v768 = vpop.permute.xlu0 %767
        %771 = vset.pattern.permute.xlu0 16
        %772 = vperm.xlu0 %771, %v742
        %v773 = vpop.permute.xlu0 %772
        %776 = vset.pattern.permute.xlu0 16
        %777 = vperm.xlu0 %776, %v743
        %v778 = vpop.permute.xlu0 %777
        %781 = vset.pattern.permute.xlu0 16
        %782 = vperm.xlu0 %781, %v744
        %v783 = vpop.permute.xlu0 %782
        %786 = vset.pattern.permute.xlu0 16
        %787 = vperm.xlu0 %786, %v745
        %v788 = vpop.permute.xlu0 %787
        %791 = vset.pattern.permute.xlu0 16
        %792 = vperm.xlu0 %791, %v746
        %v793 = vpop.permute.xlu0 %792
        %796 = vset.pattern.permute.xlu0 16
        %797 = vperm.xlu0 %796, %v747
        %v798 = vpop.permute.xlu0 %797
        %801 = vset.pattern.permute.xlu0 16
        %802 = vperm.xlu0 %801, %v748
        %v803 = vpop.permute.xlu0 %802
        %806 = vset.pattern.permute.xlu0 16
        %807 = vperm.xlu0 %806, %v749
        %v808 = vpop.permute.xlu0 %807
        %811 = vset.pattern.permute.xlu0 16
        %812 = vperm.xlu0 %811, %v750
        %v813 = vpop.permute.xlu0 %812
        %816 = vset.pattern.permute.xlu0 16
        %817 = vperm.xlu0 %816, %v751
        %v818 = vpop.permute.xlu0 %817
        %821 = vset.pattern.permute.xlu0 16
        %822 = vperm.xlu0 %821, %v752
        %v823 = vpop.permute.xlu0 %822
        %826 = vset.pattern.permute.xlu0 16
        %827 = vperm.xlu0 %826, %v753
        %v828 = vpop.permute.xlu0 %827
        %831 = vset.pattern.permute.xlu0 16
        %832 = vperm.xlu0 %831, %v754
        %v833 = vpop.permute.xlu0 %832
        %v835 = vmul.f32 %v661, %v758
        %v836 = vmul.f32 %v664, %v763
        %v837 = vmul.f32 %v669, %v768
        %v838 = vmul.f32 %v672, %v773
        %v839 = vmul.f32 %v677, %v778
        %v840 = vmul.f32 %v680, %v783
        %v841 = vmul.f32 %v685, %v788
        %v842 = vmul.f32 %v688, %v793
        %v843 = vmul.f32 %v693, %v798
        %v844 = vmul.f32 %v696, %v803
        %v845 = vmul.f32 %v701, %v808
        %v846 = vmul.f32 %v704, %v813
        %v847 = vmul.f32 %v709, %v818
        %v848 = vmul.f32 %v712, %v823
        %v849 = vmul.f32 %v717, %v828
        %v850 = vmul.f32 %v720, %v833
        %vm851 = vcmp.gt.f32.partialorder %v835, 0.0
        %vm852 = vcmp.gt.f32.partialorder %v836, 0.0
        %vm853 = vcmp.gt.f32.partialorder %v837, 0.0
        %vm854 = vcmp.gt.f32.partialorder %v838, 0.0
        %vm855 = vcmp.gt.f32.partialorder %v839, 0.0
        %vm856 = vcmp.gt.f32.partialorder %v840, 0.0
        %vm857 = vcmp.gt.f32.partialorder %v841, 0.0
        %vm858 = vcmp.gt.f32.partialorder %v842, 0.0
        %vm859 = vcmp.gt.f32.partialorder %v843, 0.0
        %vm860 = vcmp.gt.f32.partialorder %v844, 0.0
        %vm861 = vcmp.gt.f32.partialorder %v845, 0.0
        %vm862 = vcmp.gt.f32.partialorder %v846, 0.0
        %vm863 = vcmp.gt.f32.partialorder %v847, 0.0
        %vm864 = vcmp.gt.f32.partialorder %v848, 0.0
        %vm865 = vcmp.gt.f32.partialorder %v849, 0.0
        %vm866 = vcmp.gt.f32.partialorder %v850, 0.0
        %v867 = vmin.f32 %v835, 0.0
        %v868 = vmin.f32 %v836, 0.0
        %v869 = vmin.f32 %v837, 0.0
        %v870 = vmin.f32 %v838, 0.0
        %v871 = vmin.f32 %v839, 0.0
        %v872 = vmin.f32 %v840, 0.0
        %v873 = vmin.f32 %v841, 0.0
        %v874 = vmin.f32 %v842, 0.0
        %v875 = vmin.f32 %v843, 0.0
        %v876 = vmin.f32 %v844, 0.0
        %v877 = vmin.f32 %v845, 0.0
        %v878 = vmin.f32 %v846, 0.0
        %v879 = vmin.f32 %v847, 0.0
        %v880 = vmin.f32 %v848, 0.0
        %v881 = vmin.f32 %v849, 0.0
        %v882 = vmin.f32 %v850, 0.0
        %v883 = vmul.f32 %v867, 1.442695
        %v884 = vpow.pop %v883
        %v885 = vmul.f32 %v868, 1.442695
        %v886 = vpow.pop %v885
        %v887 = vmul.f32 %v869, 1.442695
        %v888 = vpow.pop %v887
        %v889 = vmul.f32 %v870, 1.442695
        %v890 = vpow.pop %v889
        %v891 = vmul.f32 %v871, 1.442695
        %v892 = vpow.pop %v891
        %v893 = vmul.f32 %v872, 1.442695
        %v894 = vpow.pop %v893
        %v895 = vmul.f32 %v873, 1.442695
        %v896 = vpow.pop %v895
        %v897 = vmul.f32 %v874, 1.442695
        %v898 = vpow.pop %v897
        %v899 = vmul.f32 %v875, 1.442695
        %v900 = vpow.pop %v899
        %v901 = vmul.f32 %v876, 1.442695
        %v902 = vpow.pop %v901
        %v903 = vmul.f32 %v877, 1.442695
        %v904 = vpow.pop %v903
        %v905 = vmul.f32 %v878, 1.442695
        %v906 = vpow.pop %v905
        %v907 = vmul.f32 %v879, 1.442695
        %v908 = vpow.pop %v907
        %v909 = vmul.f32 %v880, 1.442695
        %v910 = vpow.pop %v909
        %v911 = vmul.f32 %v881, 1.442695
        %v912 = vpow.pop %v911
        %v913 = vmul.f32 %v882, 1.442695
        %v914 = vpow.pop %v913
        %v915 = vsub.f32 %v884, 1.0
        %v916 = vsub.f32 %v886, 1.0
        %v917 = vsub.f32 %v888, 1.0
        %v918 = vsub.f32 %v890, 1.0
        %v919 = vsub.f32 %v892, 1.0
        %v920 = vsub.f32 %v894, 1.0
        %v921 = vsub.f32 %v896, 1.0
        %v922 = vsub.f32 %v898, 1.0
        %v923 = vsub.f32 %v900, 1.0
        %v924 = vsub.f32 %v902, 1.0
        %v925 = vsub.f32 %v904, 1.0
        %v926 = vsub.f32 %v906, 1.0
        %v927 = vsub.f32 %v908, 1.0
        %v928 = vsub.f32 %v910, 1.0
        %v929 = vsub.f32 %v912, 1.0
        %v930 = vsub.f32 %v914, 1.0
        %v931 = vsel %vm851, %v835, %v915
        %v932 = vsel %vm852, %v836, %v916
        %v933 = vsel %vm853, %v837, %v917
        %v934 = vsel %vm854, %v838, %v918
        %v935 = vsel %vm855, %v839, %v919
        %v936 = vsel %vm856, %v840, %v920
        %v937 = vsel %vm857, %v841, %v921
        %v938 = vsel %vm858, %v842, %v922
        %v939 = vsel %vm859, %v843, %v923
        %v940 = vsel %vm860, %v844, %v924
        %v941 = vsel %vm861, %v845, %v925
        %v942 = vsel %vm862, %v846, %v926
        %v943 = vsel %vm863, %v847, %v927
        %v944 = vsel %vm864, %v848, %v928
        %v945 = vsel %vm865, %v849, %v929
        %v946 = vsel %vm866, %v850, %v930
        %v947 = vpack.c.bf16 %v932, %v931
        %v948 = vpack.c.bf16 %v934, %v933
        %v949 = vpack.c.bf16 %v936, %v935
        %v950 = vpack.c.bf16 %v938, %v937
        %v951 = vpack.c.bf16 %v940, %v939
        %v952 = vpack.c.bf16 %v942, %v941
        %v953 = vpack.c.bf16 %v944, %v943
        %v954 = vpack.c.bf16 %v946, %v945
        %v963 = vunpack.c.l.b16 %v947
        %v964 = vunpack.c.h.b16 %v947
        %v965 = vunpack.c.l.b16 %v948
        %v966 = vunpack.c.h.b16 %v948
        %v967 = vunpack.c.l.b16 %v949
        %v968 = vunpack.c.h.b16 %v949
        %v969 = vunpack.c.l.b16 %v950
        %v970 = vunpack.c.h.b16 %v950
        %v971 = vunpack.c.l.b16 %v951
        %v972 = vunpack.c.h.b16 %v951
        %v973 = vunpack.c.l.b16 %v952
        %v974 = vunpack.c.h.b16 %v952
        %v975 = vunpack.c.l.b16 %v953
        %v976 = vunpack.c.h.b16 %v953
        %v977 = vunpack.c.l.b16 %v954
        %v978 = vunpack.c.h.b16 %v954
        %v979 = vpack.c.b16 %v963, %v963
        %v980 = vpack.c.b16 %v964, %v964
        %v981 = vpack.c.b16 %v965, %v965
        %v982 = vpack.c.b16 %v966, %v966
        %v983 = vpack.c.b16 %v967, %v967
        %v984 = vpack.c.b16 %v968, %v968
        %v985 = vpack.c.b16 %v969, %v969
        %v986 = vpack.c.b16 %v970, %v970
        %v987 = vpack.c.b16 %v971, %v971
        %v988 = vpack.c.b16 %v972, %v972
        %v989 = vpack.c.b16 %v973, %v973
        %v990 = vpack.c.b16 %v974, %v974
        %v991 = vpack.c.b16 %v975, %v975
        %v992 = vpack.c.b16 %v976, %v976
        %v993 = vpack.c.b16 %v977, %v977
        %v994 = vpack.c.b16 %v978, %v978
        %1011 = vst [vmem:[%s242] sm:$0xf] %v979
        %1012 = vst [vmem:[%s242 + $0x4] sm:$0xf] %v980
        %1013 = vst [vmem:[%s242 + $0x8] sm:$0xf] %v981
        %1014 = vst [vmem:[%s242 + $0xc] sm:$0xf] %v982
        %1015 = vst [vmem:[%s242 + $0x10] sm:$0xf] %v983
        %1016 = vst [vmem:[%s242 + $0x14] sm:$0xf] %v984
        %1017 = vst [vmem:[%s242 + $0x18] sm:$0xf] %v985
        %1018 = vst [vmem:[%s242 + $0x1c] sm:$0xf] %v986
        %1019 = vst [vmem:[%s242 + $0x20] sm:$0xf] %v987
        %1020 = vst [vmem:[%s242 + $0x24] sm:$0xf] %v988
        %1021 = vst [vmem:[%s242 + $0x28] sm:$0xf] %v989
        %1022 = vst [vmem:[%s242 + $0x2c] sm:$0xf] %v990
        %1023 = vst [vmem:[%s242 + $0x30] sm:$0xf] %v991
        %1024 = vst [vmem:[%s242 + $0x34] sm:$0xf] %v992
        %1025 = vst [vmem:[%s242 + $0x38] sm:$0xf] %v993
        %1026 = vst [vmem:[%s242 + $0x3c] sm:$0xf] %v994
        %s1027 = sand.u32 %s141, 1
        %s1028 = scalar_lea.sflag [#allocation3], %s1027
        %s1029 = sand.u32 %s141, 1
        %s1030 = smul.addr %s1029, 64
        %s1031 = scalar_lea.vmem [#allocation2], %s1030
        // Predicated region
        $region37: #{tpu_custom_call.1} parent=35 // pred_check
          %p1032 = pneg %p151
        $region38: #{tpu_custom_call.1} parent=35 // pred_check_branch
          %1034 = sbr.rel (%p1032) target = $region40
        $region39: #{tpu_custom_call.1} parent=35 // pred_region
          %s1035 = smul.u32 16, %s22
          %s1037 = ssub.s32 1024, 1024
          %1038 = vsyncadd %s1028, %s1037
          %s1039 = smul.addr %s23, 16
          %s1040 = sadd.s32 %s1035, %s1039
          %s1041 = smul.addr %s1040, 64
          %s1042 = scalar_lea.hbm %s4, %s1041
          %s1043 = sshll.u32 %s1031, 4
          %s1044 = int_to_ptr.vmem [resolvable:$true] %s1043
          %1049 = dma.vmem_to_hbm [thread:$0]  %s1044, 1024, %s1042, %s1028, 64, 64, 4
        $region40: #{tpu_custom_call.1} parent=35 // pred_fallthru
          _
      $region36: #{tpu_custom_call.1} parent=5 // pred_fallthru
        _
      %p1050 = scmp.le.s32.totalorder 2, %s13
      // Predicated region
      $region41: #{tpu_custom_call.1} parent=5 // pred_check
        %p1051 = pneg %p1050
      $region42: #{tpu_custom_call.1} parent=5 // pred_check_branch
        %1053 = sbr.rel (%p1051) target = $region44
      $region43: #{tpu_custom_call.1} parent=5 // pred_region
        %s1054 = ssub.s32 %s13, 2
        // Predicated region
        $region45: #{tpu_custom_call.1} parent=43 // pred_check
          %p1055 = pneg %p157
        $region46: #{tpu_custom_call.1} parent=43 // pred_check_branch
          %1057 = sbr.rel (%p1055) target = $region48
        $region47: #{tpu_custom_call.1} parent=43 // pred_region
          %s1058 = sand.u32 %s142, 1
          %s1059 = scalar_lea.sflag [#allocation3], %s1058
          %s1060 = sand.u32 %s142, 1
          %s1061 = smul.addr %s1060, 64
          %s1062 = scalar_lea.vmem [#allocation2], %s1061
          %1063 = dma.done %s1059, 1024
        $region48: #{tpu_custom_call.1} parent=43 // pred_fallthru
          _
      $region44: #{tpu_custom_call.1} parent=5 // pred_fallthru
        _
    $region6: #{tpu_custom_call.1} parent=1 // loop_footer
      %s17 = sadd.s32 1, %s13
    $region7: #{tpu_custom_call.1} parent=1 // loop_footer_branch
      %12 = sbr.rel target = $region3
    $region8: #{tpu_custom_call.1} parent=1 // loop_exit
      _
    %1064 = vsyncpa [#allocation3], 1
    %s1065 = scalar_lea.sflag [#allocation3], 1
    %1066 = vsyncpa %s1065, 1

</llo_original>
